<compile_context>
chip_gen: v6e
topology: v6e:2x2x1
jax: 0.10.0
libtpu: 0.0.40
codegen_flags: <defaults>
</compile_context>

<pallas_src>
import jax
import jax.numpy as jnp
from jax.experimental import pallas as pl
from jax.experimental.pallas import tpu as pltpu


def _round_up(x, m):
    return ((x + m - 1) // m) * m


def _tpu_params():
    """(vmem_capacity_bytes, mxu_align, dual_tensorcore) with safe fallbacks."""
    vmem = 64 * 1024 * 1024            # conservative default (v7x per-TC)
    align, dual_tc = 256, True
    try:
        vmem = int(pltpu.get_tpu_info().vmem_capacity_bytes)
    except Exception:
        pass
    try:
        kind = jax.devices()[0].device_kind.lower()
        if "v5 lite" in kind or "v5e" in kind or "v5litepod" in kind:
            align, dual_tc = 128, False          # 4x128^2 MXU, 1 TC, 128 MiB VMEM
        elif "v6" in kind:
            align, dual_tc = 256, False          # 2x256^2 MXU, 1 TC, 128 MiB VMEM
        elif "v7" in kind:
            align, dual_tc = 256, True           # 2x256^2 MXU, 2 TCs, 64 MiB VMEM/TC
        else:
            dual_tc = vmem <= 64 * 1024 * 1024
    except Exception:
        pass
    return vmem, align, dual_tc


def _linear_kernel(x_ref, wt_ref, b_ref, o_ref):
    # x_ref : (TB, dim)   batch tile of flattened features (input dtype)
    # wt_ref: (dim, TN)   transposed bf16 weight tile (fully resident when TN=nl_pad)
    # b_ref : (1, TN)     f32 bias tile
    # o_ref : (TB, TN)    output tile
    x = x_ref[...]
    if x.dtype != wt_ref.dtype:
        x = x.astype(wt_ref.dtype)               # VPU cast, hidden under the tile DMA
    acc = jnp.dot(x, wt_ref[...], preferred_element_type=jnp.float32)
    o_ref[...] = (acc + b_ref[...]).astype(o_ref.dtype)


def _choose_tb(B, per_row_bytes, *, align, budget, min_steps):
    """Largest MXU-aligned batch tile whose double-buffered working set fits
    `budget`, keeping >= min_steps grid steps when the batch allows it."""
    if B <= align and B * per_row_bytes <= budget:
        return B                                  # one full-extent block
    tb = int(budget // max(per_row_bytes, 1))     # VMEM-budgeted rows
    tb = min(tb, 1024, B)                         # diminishing returns past 1024
    if B >= min_steps * align:                    # keep the pipeline / both TCs busy
        tb = min(tb, B // min_steps)
    tb_aligned = (tb // align) * align            # MXU-aligned, no ragged tiles
    if tb_aligned >= align:
        tb = tb_aligned
    else:
        tb = max((tb // 8) * 8, 8)                # huge-dim fallback: sublane only
    return min(tb, B)


def linear_classifier_forward(x, weight, bias, *, tb=None,
                              compute_dtype=jnp.bfloat16,
                              return_padded=False):
    """Pallas equivalent of LinearClassifier.forward.

    x      : any shape (B, ...) — flattened to (B, dim)   (glue: x.view(B, -1))
    weight : (num_labels, dim)   PyTorch nn.Linear convention
    bias   : (num_labels,)

    Tip: if the frozen DINO features can be produced in bf16 upstream, pass x as
    bf16 — x reads dominate HBM traffic, so this is ~2x wall-clock on all chips.
    (Do NOT cast here: a wrapper-side cast is an extra HBM pass.)
    """
    B = x.shape[0]
    x2 = x.reshape(B, -1)                          # glue: view(B, -1)
    dim = x2.shape[1]
    num_labels = weight.shape[0]
    assert weight.shape == (num_labels, dim)
    assert bias.shape == (num_labels,)

    out_dtype = x2.dtype
    x_itemsize = jnp.dtype(x2.dtype).itemsize
    out_itemsize = jnp.dtype(out_dtype).itemsize
    w_itemsize = jnp.dtype(compute_dtype).itemsize

    vmem_cap, align, dual_tc = _tpu_params()
    tile_budget = min(32 * 1024 * 1024, vmem_cap // 3)   # ~32 MiB on 128 MiB parts, ~21 MiB on v7x
    min_steps = 4 if dual_tc else 2                      # v7x: >= 4 steps so each TC pipelines
    vmem_cap_limit = (40 * 1024 * 1024 if vmem_cap <= 64 * 1024 * 1024
                      else 96 * 1024 * 1024)

    # --- Label-axis tiling decision -----------------------------------------
    # Keep W fully resident (single-buffered) when its bf16 slab fits the budget;
    # otherwise stream it in lane-aligned tn-wide tiles (double-buffered) so
    # many-class probes (10k-22k labels) don't blow VMEM.
    nl_128 = _round_up(num_labels, 128)
    w_budget = min(24 * 1024 * 1024, vmem_cap // 3)
    if dim * nl_128 * w_itemsize <= w_budget:
        tn = nl_128
    else:
        tn = (w_budget // (2 * dim * w_itemsize) // 128) * 128
        tn = int(min(max(tn, 128), 2048))
    nl_pad = _round_up(num_labels, tn)
    nn = nl_pad // tn
    resident_w = (nn == 1)

    # One-time transpose + cast + zero-pad of the frozen probe weight / bias.
    # (Hoist out of any per-step jit if the weight is static.)
    wt = jnp.zeros((dim, nl_pad), dtype=compute_dtype)
    wt = wt.at[:, :num_labels].set(weight.T.astype(compute_dtype))
    b2 = jnp.zeros((1, nl_pad), dtype=jnp.float32)
    b2 = b2.at[:, :num_labels].set(bias.astype(jnp.float32).reshape(1, num_labels))

    # --- Batch tile ----------------------------------------------------------
    cast_row = dim * w_itemsize if jnp.dtype(x2.dtype) != jnp.dtype(compute_dtype) else 0
    per_row = 2 * dim * x_itemsize + 2 * tn * out_itemsize + cast_row
    if tb is None:
        tb = _choose_tb(B, per_row, align=align, budget=tile_budget,
                        min_steps=min_steps)
    else:
        tb = min(max(int(tb), 1), B)
        if tb != B:
            tb = max((tb // 8) * 8, 8)             # keep the (8, 128) block rule
    nb = pl.cdiv(B, tb)
    grid = (nn, nb)                                # label tiles outer, batch inner
                                                   # (W block loaded once per j)

    # --- VMEM estimate (no double-counted W, bf16 cast temp included) --------
    w_bufs = 1 if resident_w else 2
    est = (w_bufs * dim * tn * w_itemsize          # W tile(s)
           + w_bufs * tn * 4                       # bias tile(s)
           + 2 * tb * dim * x_itemsize             # double-buffered x tiles
           + tb * cast_row                         # in-kernel bf16 copy of x tile
           + 2 * tb * tn * out_itemsize)           # double-buffered out tiles
    vmem_limit = int(min(max(est * 5 // 4, 8 * 1024 * 1024), vmem_cap_limit))

    cost = pl.CostEstimate(
        flops=2 * B * dim * nl_pad,
        transcendentals=0,
        bytes_accessed=(nn * x2.size * x_itemsize      # x re-read per label tile
                        + dim * nl_pad * w_itemsize
                        + nl_pad * 4
                        + B * nl_pad * out_itemsize),
    )

    # Single-buffer the grid-invariant W / bias specs only in the resident case.
    w_kwargs = {}
    if resident_w and hasattr(pl, "Buffered"):
        w_kwargs = dict(pipeline_mode=pl.Buffered(1))

    x_spec = pl.BlockSpec((tb, dim), lambda j, i: (i, 0))
    w_spec = pl.BlockSpec((dim, tn), lambda j, i: (0, j), **w_kwargs)
    b_spec = pl.BlockSpec((1, tn), lambda j, i: (0, j), **w_kwargs)
    out_spec = pl.BlockSpec((tb, tn), lambda j, i: (i, j))

    out_padded = pl.pallas_call(
        _linear_kernel,
        out_shape=jax.ShapeDtypeStruct((B, nl_pad), out_dtype),
        grid_spec=pltpu.PrefetchScalarGridSpec(
            num_scalar_prefetch=0,
            grid=grid,
            in_specs=[x_spec, w_spec, b_spec],
            out_specs=out_spec,
        ),
        compiler_params=pltpu.CompilerParams(
            dimension_semantics=("parallel", "parallel"),
            vmem_limit_bytes=vmem_limit,
        ),
        cost_estimate=cost,
    )(x2, wt, b2)

    if return_padded:
        # Lets the consumer fuse the slice with a downstream argmax/softmax.
        return out_padded
    return out_padded[:, :num_labels]


if __name__ == "__main__":
    key = jax.random.PRNGKey(0)
    k_x, k_w = jax.random.split(key)

    # Small shapes: frozen-feature tensor (8, 2, 4, 4) -> dim = 32; 10 labels
    # (exercises the 10 -> 128 lane-padding path and the resident-W path).
    B, C, H, W = 8, 2, 4, 4
    dim = C * H * W
    num_labels = 10

    x = jax.random.normal(k_x, (B, C, H, W), dtype=jnp.float32)

    # Deterministic init matching the module: weight ~ N(0, 0.01), bias = 0.
    weight = 0.01 * jax.random.normal(k_w, (num_labels, dim), dtype=jnp.float32)
    bias = jnp.zeros((num_labels,), dtype=jnp.float32)

    out = linear_classifier_forward(x, weight, bias)
    out = jax.block_until_ready(out)

    # Correctness check against plain-JAX f32 reference (kernel computes in bf16
    # with f32 accumulation).
    ref = x.reshape(B, -1) @ weight.T + bias
    assert out.shape == (B, num_labels)
    assert out.dtype == x.dtype
    assert jnp.allclose(out, ref, atol=2e-3, rtol=2e-2), float(
        jnp.max(jnp.abs(out - ref)))

    print("KERNEL_OK")
</pallas_src>

<mosaic_0001>
module attributes {stable_mosaic.version = 11 : i64} {
  func.func @_linear_kernel(%arg0: i32, %arg1: i32, %arg2: memref<8x32xf32, #tpu.memory_space<vmem>>, %arg3: memref<32x128xbf16, #tpu.memory_space<vmem>>, %arg4: memref<1x128xf32, #tpu.memory_space<vmem>>, %arg5: memref<8x128xf32, #tpu.memory_space<vmem>>) attributes {dimension_semantics = [#tpu.dimension_semantics<parallel>, #tpu.dimension_semantics<parallel>], iteration_bounds = array<i64: 1, 1>, scalar_prefetch = 0 : i64, scratch_operands = 0 : i64, tpu.core_type = #tpu.core_type<tc>, window_params = [{transform_indices = @transform_0, window_bounds = array<i64: 8, 32>}, {pipeline_mode = #tpu.pipeline_mode<synchronous>, transform_indices = @transform_1, window_bounds = array<i64: 32, 128>}, {pipeline_mode = #tpu.pipeline_mode<synchronous>, transform_indices = @transform_2, window_bounds = array<i64: 1, 128>}, {transform_indices = @transform_3, window_bounds = array<i64: 8, 128>}]} {
    %c0 = arith.constant 0 : index
    %c0_0 = arith.constant 0 : index
    %0 = vector.load %arg2[%c0, %c0_0] : memref<8x32xf32, #tpu.memory_space<vmem>>, vector<8x32xf32>
    %1 = arith.truncf %0 : vector<8x32xf32> to vector<8x32xbf16>
    %c0_1 = arith.constant 0 : index
    %c0_2 = arith.constant 0 : index
    %2 = vector.load %arg3[%c0_1, %c0_2] : memref<32x128xbf16, #tpu.memory_space<vmem>>, vector<32x128xbf16>
    %cst = arith.constant dense<0.000000e+00> : vector<8x128xf32>
    %3 = tpu.matmul %1, %2, %cst {dimension_numbers = #tpu.dot_dimension_numbers<[1], [0], [0], [1], [0, 0, 1, 1], [], []>} : vector<8x32xbf16>, vector<32x128xbf16>, vector<8x128xf32> -> vector<8x128xf32>
    %c0_3 = arith.constant 0 : index
    %c0_4 = arith.constant 0 : index
    %4 = vector.load %arg4[%c0_3, %c0_4] : memref<1x128xf32, #tpu.memory_space<vmem>>, vector<1x128xf32>
    %5 = vector.broadcast %4 : vector<1x128xf32> to vector<8x128xf32>
    %6 = arith.addf %3, %5 : vector<8x128xf32>
    %c0_5 = arith.constant 0 : index
    %c0_6 = arith.constant 0 : index
    %7 = vector.load %arg5[%c0_5, %c0_6] : memref<8x128xf32, #tpu.memory_space<vmem>>, vector<8x128xf32>
    tpu.vector_store %arg5[%c0_5, %c0_6], %6 {strides = array<i32>} : memref<8x128xf32, #tpu.memory_space<vmem>>, vector<8x128xf32>,
    return
  }
  func.func @transform_0(%arg0: i32, %arg1: i32) -> (i32, i32) {
    %c0_i32 = arith.constant 0 : i32
    %c0_i32_0 = arith.constant 0 : i32
    return %arg1, %c0_i32 : i32, i32
  }
  func.func @transform_1(%arg0: i32, %arg1: i32) -> (i32, i32) {
    %c0_i32 = arith.constant 0 : i32
    %c0_i32_0 = arith.constant 0 : i32
    return %c0_i32, %arg0 : i32, i32
  }
  func.func @transform_2(%arg0: i32, %arg1: i32) -> (i32, i32) {
    %c0_i32 = arith.constant 0 : i32
    %c0_i32_0 = arith.constant 0 : i32
    return %c0_i32, %arg0 : i32, i32
  }
  func.func @transform_3(%arg0: i32, %arg1: i32) -> (i32, i32) {
    %c0_i32 = arith.constant 0 : i32
    return %arg1, %arg0 : i32, i32
  }
}

</mosaic_0001>

<llo_original>
// kernel: tpu_custom_call.1
$region0: #{tpu_custom_call.1}
  #allocation0 [shape = 'u32[]', space=smem, size = 0x4, offset = 0x4, fixed_abs, tag = 'smem constant byte address 0x4 - core index']
  #allocation1 [shape = 'u32[144,128]{1,0:T(1,128)}', space=vmem, size = 0x12000, scoped, tag = 'internal scratch']
  %s0 = inlined_call_operand.hbm [shape: f32[8,32], index: 0, kind: input, shape index: {}]
  %s1 = inlined_call_operand.hbm [shape: bf16[32,128], index: 1, kind: input, shape index: {}]
  %s2 = inlined_call_operand.vmem [shape: f32[1,128], index: 2, kind: input, shape index: {}]
  %s3 = inlined_call_operand.hbm [shape: f32[8,128], index: 3, kind: output, shape index: {}]
  %s4 = sld [smem:[#allocation0]]
  $region30: #{tpu_custom_call.1} parent=0
    _
  %s6 = ssub.s32 1, %s4
  %s7 = scalar_select 0, %s6, %s4
  $region1: #{tpu_custom_call.1} parent=0
    #allocation2 [shape = 'u8[4096]{0}', space=vmem, size = 0x1000, scoped, tag = 'input window, operand 0, single buffered']
    #allocation3 [shape = 's32[1]{0}', space=sflag, size = 0x4, scoped, tag = 'scoped memory for tpu_custom_call.1']
    #allocation4 [shape = 's32[1]{0}', space=sflag, size = 0x4, scoped, tag = 'scoped memory for tpu_custom_call.1']
    #allocation5 [shape = 'u8[8192]{0}', space=vmem, size = 0x2000, scoped, tag = 'input window, operand 1, single buffered']
    #allocation6 [shape = 's32[1]{0}', space=sflag, size = 0x4, scoped, tag = 'scoped memory for tpu_custom_call.1']
    #allocation7 [shape = 'u8[4096]{0}', space=vmem, size = 0x1000, scoped, tag = 'output window, operand 0, single buffered']
    %8 = vsyncpa [#allocation3], 0
    %9 = vsyncpa [#allocation6], 0
    %10 = vsyncpa [#allocation4], 0
    // Predicated region
    $region2: #{tpu_custom_call.1} parent=1 // pred_check
      _
    $region3: #{tpu_custom_call.1} parent=1 // pred_check_branch
      %12 = sbr.rel (0) target = $region5
    $region4: #{tpu_custom_call.1} parent=1 // pred_region
      %s14 = ssub.s32 128, 128
      %15 = vsyncadd [#allocation3], %s14
      %s17 = sshll.u32 [#allocation2], 4
      %s18 = int_to_ptr.vmem [resolvable:$true] %s17
      %20 = dma.hbm_to_vmem [thread:$0]  %s0, 128, %s18, [#allocation3]
    $region5: #{tpu_custom_call.1} parent=1 // pred_fallthru
      _
    // Predicated region
    $region6: #{tpu_custom_call.1} parent=1 // pred_check
      _
    $region7: #{tpu_custom_call.1} parent=1 // pred_check_branch
      %22 = sbr.rel (0) target = $region9
    $region8: #{tpu_custom_call.1} parent=1 // pred_region
      %s24 = ssub.s32 256, 256
      %25 = vsyncadd [#allocation6], %s24
      %s26 = sshll.u32 [#allocation5], 4
      %s27 = int_to_ptr.vmem [resolvable:$true] %s26
      %32 = dma.hbm_to_vmem [thread:$0]  %s1, 256, %s27, [#allocation6], 64, 64, 4
    $region9: #{tpu_custom_call.1} parent=1 // pred_fallthru
      _
    // Predicated region
    $region10: #{tpu_custom_call.1} parent=1 // pred_check
      _
    $region11: #{tpu_custom_call.1} parent=1 // pred_check_branch
      %34 = sbr.rel (0) target = $region13
    $region12: #{tpu_custom_call.1} parent=1 // pred_region
      _
    $region13: #{tpu_custom_call.1} parent=1 // pred_fallthru
      _
    // Predicated region
    $region14: #{tpu_custom_call.1} parent=1 // pred_check
      _
    $region15: #{tpu_custom_call.1} parent=1 // pred_check_branch
      %36 = sbr.rel (0) target = $region17
    $region16: #{tpu_custom_call.1} parent=1 // pred_region
      %37 = dma.done [#allocation3], 128
    $region17: #{tpu_custom_call.1} parent=1 // pred_fallthru
      _
    // Predicated region
    $region18: #{tpu_custom_call.1} parent=1 // pred_check
      _
    $region19: #{tpu_custom_call.1} parent=1 // pred_check_branch
      %39 = sbr.rel (0) target = $region21
    $region20: #{tpu_custom_call.1} parent=1 // pred_region
      %40 = dma.done [#allocation6], 256
    $region21: #{tpu_custom_call.1} parent=1 // pred_fallthru
      _
    %v42 = vld [vmem:[#allocation2] sm:$0xff]
    %v43 = vpack.c.bf16 %v42, %v42
    %v44 = vld [vmem:[#allocation5] sm:$0xf]
    %v45 = vld [vmem:[#allocation5 + $0x4] sm:$0xf]
    %v46 = vld [vmem:[#allocation5 + $0x8] sm:$0xf]
    %v47 = vld [vmem:[#allocation5 + $0xc] sm:$0xf]
    %v48 = vld [vmem:[%s2] sm:$0x1]
    %v50 = vlaneseq
    %v51 = vshrl.u32 %v50, 7
    %v52 = vsub.s32 0, %v51
    %v53 = vrot.slane %v48, %v52
    %v59 = vunpack.c.l.b16 %v44
    %v60 = vunpack.c.l.b16 %v45
    %v61 = vunpack.c.l.b16 %v46
    %v62 = vunpack.c.l.b16 %v47
    %v63 = vpack.c.b16 %v60, %v59
    %v64 = vpack.c.b16 %v62, %v61
    %vm67 = vcmask 261120
    %v69 = vsel %vm67, %v43, 0
    %71 = vmatprep.subr.bf16.mxu0 0
    %72 = vmatpush1.bf16.msra.mxu0 0
    %73 = vmatprep.subr.bf16.mxu0 0
    %74 = vmatpush1.bf16.msra.mxu0 0
    %75 = vmatprep.subr.bf16.mxu0 0
    %76 = vmatpush1.bf16.msra.mxu0 0
    %77 = vmatprep.subr.bf16.mxu0 0
    %78 = vmatpush1.bf16.msra.mxu0 0
    %79 = vmatprep.subr.bf16.mxu0 0
    %80 = vmatpush1.bf16.msra.mxu0 0
    %81 = vmatprep.subr.bf16.mxu0 0
    %82 = vmatpush1.bf16.msra.mxu0 0
    %83 = vmatprep.subr.bf16.mxu0 0
    %84 = vmatpush1.bf16.msra.mxu0 %v64
    %85 = vmatprep.subr.bf16.mxu0 0
    %86 = vmatpush1.bf16.msra.mxu0 %v63
    %87 = vmatprep.subr.bf16.mxu0 0
    %88 = vmatpush2.bf16.msra.mxu0 0
    %89 = vmatprep.subr.bf16.mxu0 0
    %90 = vmatpush2.bf16.msra.mxu0 0
    %91 = vmatprep.subr.bf16.mxu0 0
    %92 = vmatpush2.bf16.msra.mxu0 0
    %93 = vmatprep.subr.bf16.mxu0 0
    %94 = vmatpush2.bf16.msra.mxu0 0
    %95 = vmatprep.subr.bf16.mxu0 0
    %96 = vmatpush2.bf16.msra.mxu0 0
    %97 = vmatprep.subr.bf16.mxu0 0
    %98 = vmatpush2.bf16.msra.mxu0 0
    %99 = vmatprep.subr.bf16.mxu0 0
    %100 = vmatpush2.bf16.msra.mxu0 0
    %101 = vmatprep.subr.bf16.mxu0 0
    %102 = vmatpush2.bf16.msra.mxu0 0
    %103 = vmatprep.mubr.bf16.mxu0 0
    %104 = vmatmul.mubr.bf16.gmra.mxu0 %v69
    %v105 = vpop.f32.mrf.mxu0
    %v106 = vadd.f32 %v53, %v105
    %v107 = vpop.f32.mrf.mxu0
    %v108 = vpop.f32.mrf.mxu0
    %v109 = vpop.f32.mrf.mxu0
    %110 = vdwg.mxu0
    %111 = vst [vmem:[#allocation7] sm:$0xff] %v106
    // Predicated region
    $region22: #{tpu_custom_call.1} parent=1 // pred_check
      _
    $region23: #{tpu_custom_call.1} parent=1 // pred_check_branch
      %113 = sbr.rel (0) target = $region25
    $region24: #{tpu_custom_call.1} parent=1 // pred_region
      %s115 = ssub.s32 128, 128
      %116 = vsyncadd [#allocation4], %s115
      %s118 = sshll.u32 [#allocation7], 4
      %s119 = int_to_ptr.vmem [resolvable:$true] %s118
      %121 = dma.vmem_to_hbm [thread:$0]  %s119, 128, %s3, [#allocation4]
    $region25: #{tpu_custom_call.1} parent=1 // pred_fallthru
      _
    // Predicated region
    $region26: #{tpu_custom_call.1} parent=1 // pred_check
      _
    $region27: #{tpu_custom_call.1} parent=1 // pred_check_branch
      %123 = sbr.rel (0) target = $region29
    $region28: #{tpu_custom_call.1} parent=1 // pred_region
      %124 = dma.done [#allocation4], 128
    $region29: #{tpu_custom_call.1} parent=1 // pred_fallthru
      _
    %125 = vsyncpa [#allocation3], 1
    %126 = vsyncpa [#allocation6], 1
    %127 = vsyncpa [#allocation4], 1

</llo_original>
